<compile_context>
chip_gen: v7x
topology: tpu7x:2x2x1
jax: 0.10.0
libtpu: 0.0.40
codegen_flags: <defaults>
</compile_context>

<pallas_src>
import functools

import jax
import jax.numpy as jnp
from jax.experimental import pallas as pl
from jax.experimental.pallas import tpu as pltpu

EPS = 1e-5      # PyTorch BatchNorm2d default eps
LANES = 128
SUBLANES = 8


def _round_up(x, m):
    return (x + m - 1) // m * m


# ---------------------------------------------------------------------------
# Pass 1: convolution as an MXU matmul + per-tile partial BN statistics.
# ---------------------------------------------------------------------------
def conv_stats_kernel(p_ref, w_ref, y_ref, psum_ref, psq_ref):
    # p_ref:    (TILE_M, K_pad)   im2col patch tile
    # w_ref:    (K_pad, C_pad)    conv weight (resident across all M tiles)
    # y_ref:    (TILE_M, C_pad)   conv output tile (f32)
    # psum_ref: (8, C_pad)        per-tile partial sum  (folded over sublanes)
    # psq_ref:  (8, C_pad)        per-tile partial sum of squares
    y = jnp.dot(p_ref[...], w_ref[...], preferred_element_type=jnp.float32)
    y_ref[...] = y
    tm, c = y.shape
    yf = y.reshape(tm // SUBLANES, SUBLANES, c)     # no-op relayout
    psum_ref[...] = jnp.sum(yf, axis=0)             # cheap VPU adds
    psq_ref[...] = jnp.sum(yf * yf, axis=0)


# ---------------------------------------------------------------------------
# Pass 2: apply precomputed per-channel scale/shift (y * scale + shift).
# ---------------------------------------------------------------------------
def bn_apply_kernel(y_ref, scale_ref, shift_ref, o_ref):
    o_ref[...] = (y_ref[...] * scale_ref[...] + shift_ref[...]).astype(o_ref.dtype)


def _im2col(x_nchw, ksize, stride, pad):
    """Plain-JAX glue: NCHW -> padded NHWC -> (M, KH*KW*Cin) patches."""
    # TODO(synk): avoid the KH*KW-fold HBM amplification by gridding over
    # (kh, kw) with shifted-window index_maps on the padded NHWC input.
    N, C, H, W = x_nchw.shape
    x = jnp.transpose(x_nchw, (0, 2, 3, 1))                        # NHWC
    x = jnp.pad(x, ((0, 0), (pad, pad), (pad, pad), (0, 0)))
    Ho = (H + 2 * pad - ksize) // stride + 1
    Wo = (W + 2 * pad - ksize) // stride + 1
    cols = []
    for kh in range(ksize):
        for kw in range(ksize):
            cols.append(x[:, kh:kh + Ho * stride:stride,
                          kw:kw + Wo * stride:stride, :])
    patches = jnp.concatenate(cols, axis=-1)                       # (N,Ho,Wo,K)
    return patches.reshape(N * Ho * Wo, ksize * ksize * C), Ho, Wo


@functools.partial(jax.jit, static_argnames=("ksize", "stride", "tile_m"))
def base_conv_no_act(x_nchw, conv_w, gamma, beta, *, ksize, stride, tile_m=512):
    """Forward of BaseConv_no_act. conv_w is PyTorch OIHW: (Cout, Cin, KH, KW)."""
    pad = (ksize - 1) // 2
    N, Cin, H, W = x_nchw.shape
    Cout = conv_w.shape[0]

    patches, Ho, Wo = _im2col(x_nchw, ksize, stride, pad)          # (M, K)
    M, K = patches.shape

    # Lane/sublane-friendly padding.
    K_pad = _round_up(K, SUBLANES)
    C_pad = _round_up(Cout, LANES)
    tile_m = _round_up(max(SUBLANES, min(tile_m, _round_up(M, SUBLANES))), SUBLANES)
    M_pad = _round_up(M, tile_m)
    n_tiles = M_pad // tile_m

    patches = jnp.pad(patches, ((0, M_pad - M), (0, K_pad - K)))
    # OIHW -> (KH, KW, Cin, Cout) -> (K, Cout), matching patch column order.
    w2d = jnp.transpose(conv_w, (2, 3, 1, 0)).reshape(K, Cout)
    w2d = jnp.pad(w2d, ((0, K_pad - K), (0, C_pad - Cout)))

    # ---- Pass 1: conv + partial statistics (grid over M tiles, parallel). ---
    y, psum, psq = pl.pallas_call(
        conv_stats_kernel,
        out_shape=(
            jax.ShapeDtypeStruct((M_pad, C_pad), jnp.float32),
            jax.ShapeDtypeStruct((n_tiles * SUBLANES, C_pad), jnp.float32),
            jax.ShapeDtypeStruct((n_tiles * SUBLANES, C_pad), jnp.float32),
        ),
        grid=(n_tiles,),
        in_specs=[
            pl.BlockSpec((tile_m, K_pad), lambda i: (i, 0)),
            pl.BlockSpec((K_pad, C_pad), lambda i: (0, 0)),   # weight: resident
        ],
        out_specs=(
            pl.BlockSpec((tile_m, C_pad), lambda i: (i, 0)),
            pl.BlockSpec((SUBLANES, C_pad), lambda i: (i, 0)),
            pl.BlockSpec((SUBLANES, C_pad), lambda i: (i, 0)),
        ),
        compiler_params=pltpu.CompilerParams(dimension_semantics=("parallel",)),
    )(patches, w2d)

    # ---- Tiny host-side glue: finalize per-channel scale / shift (1 x C). ---
    # Padded patch rows are all-zero -> contribute nothing to the sums; the
    # true element count M = N*Ho*Wo is used for the mean / biased variance.
    sum_y = jnp.sum(psum, axis=0)                                  # (C_pad,)
    sum_y2 = jnp.sum(psq, axis=0)
    mean = sum_y / M
    var = jnp.maximum(sum_y2 / M - mean * mean, 0.0)               # biased var
    inv = jax.lax.rsqrt(var + EPS)
    gamma_p = jnp.pad(gamma.astype(jnp.float32), (0, C_pad - Cout),
                      constant_values=1.0)
    beta_p = jnp.pad(beta.astype(jnp.float32), (0, C_pad - Cout))
    scale = (gamma_p * inv).reshape(1, C_pad)
    shift = (beta_p - mean * gamma_p * inv).reshape(1, C_pad)

    # ---- Pass 2: normalize (grid over M tiles, parallel, lane-dense out). ---
    out2d = pl.pallas_call(
        bn_apply_kernel,
        out_shape=jax.ShapeDtypeStruct((M_pad, C_pad), x_nchw.dtype),
        grid=(n_tiles,),
        in_specs=[
            pl.BlockSpec((tile_m, C_pad), lambda i: (i, 0)),
            pl.BlockSpec((1, C_pad), lambda i: (0, 0)),       # scale: resident
            pl.BlockSpec((1, C_pad), lambda i: (0, 0)),       # shift: resident
        ],
        out_specs=pl.BlockSpec((tile_m, C_pad), lambda i: (i, 0)),
        compiler_params=pltpu.CompilerParams(dimension_semantics=("parallel",)),
    )(y, scale, shift)

    out = out2d[:M, :Cout].reshape(N, Ho, Wo, Cout)
    return jnp.transpose(out, (0, 3, 1, 2))                        # back to NCHW


def _reference(x, conv_w, gamma, beta, *, ksize, stride):
    """Pure-JAX reference (lax conv + training-mode BN) for verification."""
    pad = (ksize - 1) // 2
    y = jax.lax.conv_general_dilated(
        x, conv_w, window_strides=(stride, stride),
        padding=((pad, pad), (pad, pad)),
        dimension_numbers=("NCHW", "OIHW", "NCHW"))
    mean = y.mean(axis=(0, 2, 3), keepdims=True)
    var = ((y - mean) ** 2).mean(axis=(0, 2, 3), keepdims=True)    # biased
    return (y - mean) / jnp.sqrt(var + EPS) * gamma.reshape(1, -1, 1, 1) \
        + beta.reshape(1, -1, 1, 1)


if __name__ == "__main__":
    # BaseConv_no_act(in_channels=4, out_channels=8, ksize=3, stride=1)
    in_channels, out_channels, ksize, stride = 4, 8, 3, 1
    N, H, W = 2, 16, 16

    key = jax.random.PRNGKey(0)
    kx, kw, kg, kb = jax.random.split(key, 4)

    x = jax.random.normal(kx, (N, in_channels, H, W), dtype=jnp.float32)
    # Conv2d weight (bias=False): OIHW.
    conv_w = 0.1 * jax.random.normal(
        kw, (out_channels, in_channels, ksize, ksize), dtype=jnp.float32)
    # BatchNorm2d affine params (perturbed so the affine path is exercised).
    gamma = 1.0 + 0.1 * jax.random.normal(kg, (out_channels,), dtype=jnp.float32)
    beta = 0.1 * jax.random.normal(kb, (out_channels,), dtype=jnp.float32)

    # tile_m=256 -> 2 grid steps at this size, exercising the tiled pipeline.
    out = base_conv_no_act(x, conv_w, gamma, beta,
                           ksize=ksize, stride=stride, tile_m=256)
    out = jax.block_until_ready(out)

    ref = _reference(x, conv_w, gamma, beta, ksize=ksize, stride=stride)
    assert out.shape == (N, out_channels, H, W)
    assert jnp.allclose(out, ref, atol=1e-4, rtol=1e-4), \
        f"max abs err {jnp.max(jnp.abs(out - ref))}"

    print("KERNEL_OK")
</pallas_src>

<mosaic_0001>
module attributes {stable_mosaic.version = 11 : i64} {
  func.func @conv_stats_kernel(%arg0: i32, %arg1: memref<256x40xf32, #tpu.memory_space<vmem>>, %arg2: memref<40x128xf32, #tpu.memory_space<vmem>>, %arg3: memref<256x128xf32, #tpu.memory_space<vmem>>, %arg4: memref<8x128xf32, #tpu.memory_space<vmem>>, %arg5: memref<8x128xf32, #tpu.memory_space<vmem>>) attributes {dimension_semantics = [#tpu.dimension_semantics<parallel>], iteration_bounds = array<i64: 2>, scalar_prefetch = 0 : i64, scratch_operands = 0 : i64, tpu.core_type = #tpu.core_type<tc>, window_params = [{transform_indices = @transform_0, window_bounds = array<i64: 256, 40>}, {pipeline_mode = #tpu.pipeline_mode<synchronous>, transform_indices = @transform_1, window_bounds = array<i64: 40, 128>}, {transform_indices = @transform_2, window_bounds = array<i64: 256, 128>}, {transform_indices = @transform_3, window_bounds = array<i64: 8, 128>}, {transform_indices = @transform_4, window_bounds = array<i64: 8, 128>}]} {
    %c0 = arith.constant 0 : index
    %c0_0 = arith.constant 0 : index
    %0 = vector.load %arg1[%c0, %c0_0] : memref<256x40xf32, #tpu.memory_space<vmem>>, vector<256x40xf32>
    %c0_1 = arith.constant 0 : index
    %c0_2 = arith.constant 0 : index
    %1 = vector.load %arg2[%c0_1, %c0_2] : memref<40x128xf32, #tpu.memory_space<vmem>>, vector<40x128xf32>
    %cst = arith.constant dense<0.000000e+00> : vector<256x128xf32>
    %2 = tpu.matmul %0, %1, %cst {dimension_numbers = #tpu.dot_dimension_numbers<[1], [0], [0], [1], [0, 0, 1, 1], [], []>} : vector<256x40xf32>, vector<40x128xf32>, vector<256x128xf32> -> vector<256x128xf32>
    %c0_3 = arith.constant 0 : index
    %c0_4 = arith.constant 0 : index
    %3 = vector.load %arg3[%c0_3, %c0_4] : memref<256x128xf32, #tpu.memory_space<vmem>>, vector<256x128xf32>
    tpu.vector_store %arg3[%c0_3, %c0_4], %2 {strides = array<i32>} : memref<256x128xf32, #tpu.memory_space<vmem>>, vector<256x128xf32>,
    %4 = vector.shape_cast %2 : vector<256x128xf32> to vector<32x8x128xf32>
    %cst_5 = arith.constant dense<0.000000e+00> : vector<8x128xf32>
    %5 = vector.multi_reduction <add>, %4, %cst_5 [0] : vector<32x8x128xf32> to vector<8x128xf32>
    %c0_6 = arith.constant 0 : index
    %c0_7 = arith.constant 0 : index
    %6 = vector.load %arg4[%c0_6, %c0_7] : memref<8x128xf32, #tpu.memory_space<vmem>>, vector<8x128xf32>
    tpu.vector_store %arg4[%c0_6, %c0_7], %5 {strides = array<i32>} : memref<8x128xf32, #tpu.memory_space<vmem>>, vector<8x128xf32>,
    %7 = arith.mulf %4, %4 : vector<32x8x128xf32>
    %cst_8 = arith.constant dense<0.000000e+00> : vector<8x128xf32>
    %8 = vector.multi_reduction <add>, %7, %cst_8 [0] : vector<32x8x128xf32> to vector<8x128xf32>
    %c0_9 = arith.constant 0 : index
    %c0_10 = arith.constant 0 : index
    %9 = vector.load %arg5[%c0_9, %c0_10] : memref<8x128xf32, #tpu.memory_space<vmem>>, vector<8x128xf32>
    tpu.vector_store %arg5[%c0_9, %c0_10], %8 {strides = array<i32>} : memref<8x128xf32, #tpu.memory_space<vmem>>, vector<8x128xf32>,
    return
  }
  func.func @transform_0(%arg0: i32) -> (i32, i32) {
    %c0_i32 = arith.constant 0 : i32
    %c0_i32_0 = arith.constant 0 : i32
    return %arg0, %c0_i32 : i32, i32
  }
  func.func @transform_1(%arg0: i32) -> (i32, i32) {
    %c0_i32 = arith.constant 0 : i32
    %c0_i32_0 = arith.constant 0 : i32
    %c0_i32_1 = arith.constant 0 : i32
    return %c0_i32, %c0_i32_0 : i32, i32
  }
  func.func @transform_2(%arg0: i32) -> (i32, i32) {
    %c0_i32 = arith.constant 0 : i32
    %c0_i32_0 = arith.constant 0 : i32
    return %arg0, %c0_i32 : i32, i32
  }
  func.func @transform_3(%arg0: i32) -> (i32, i32) {
    %c0_i32 = arith.constant 0 : i32
    %c0_i32_0 = arith.constant 0 : i32
    return %arg0, %c0_i32 : i32, i32
  }
  func.func @transform_4(%arg0: i32) -> (i32, i32) {
    %c0_i32 = arith.constant 0 : i32
    %c0_i32_0 = arith.constant 0 : i32
    return %arg0, %c0_i32 : i32, i32
  }
}

module attributes {stable_mosaic.version = 11 : i64} {
  func.func @bn_apply_kernel(%arg0: i32, %arg1: memref<256x128xf32, #tpu.memory_space<vmem>>, %arg2: memref<1x128xf32, #tpu.memory_space<vmem>>, %arg3: memref<1x128xf32, #tpu.memory_space<vmem>>, %arg4: memref<256x128xf32, #tpu.memory_space<vmem>>) attributes {dimension_semantics = [#tpu.dimension_semantics<parallel>], iteration_bounds = array<i64: 2>, scalar_prefetch = 0 : i64, scratch_operands = 0 : i64, tpu.core_type = #tpu.core_type<tc>, window_params = [{transform_indices = @transform_0, window_bounds = array<i64: 256, 128>}, {pipeline_mode = #tpu.pipeline_mode<synchronous>, transform_indices = @transform_1, window_bounds = array<i64: 1, 128>}, {pipeline_mode = #tpu.pipeline_mode<synchronous>, transform_indices = @transform_2, window_bounds = array<i64: 1, 128>}, {transform_indices = @transform_3, window_bounds = array<i64: 256, 128>}]} {
    %c0 = arith.constant 0 : index
    %c0_0 = arith.constant 0 : index
    %0 = vector.load %arg1[%c0, %c0_0] : memref<256x128xf32, #tpu.memory_space<vmem>>, vector<256x128xf32>
    %c0_1 = arith.constant 0 : index
    %c0_2 = arith.constant 0 : index
    %1 = vector.load %arg2[%c0_1, %c0_2] : memref<1x128xf32, #tpu.memory_space<vmem>>, vector<1x128xf32>
    %2 = vector.broadcast %1 : vector<1x128xf32> to vector<256x128xf32>
    %3 = arith.mulf %0, %2 : vector<256x128xf32>
    %c0_3 = arith.constant 0 : index
    %c0_4 = arith.constant 0 : index
    %4 = vector.load %arg3[%c0_3, %c0_4] : memref<1x128xf32, #tpu.memory_space<vmem>>, vector<1x128xf32>
    %5 = vector.broadcast %4 : vector<1x128xf32> to vector<256x128xf32>
    %6 = arith.addf %3, %5 : vector<256x128xf32>
    %c0_5 = arith.constant 0 : index
    %c0_6 = arith.constant 0 : index
    %7 = vector.load %arg4[%c0_5, %c0_6] : memref<256x128xf32, #tpu.memory_space<vmem>>, vector<256x128xf32>
    tpu.vector_store %arg4[%c0_5, %c0_6], %6 {strides = array<i32>} : memref<256x128xf32, #tpu.memory_space<vmem>>, vector<256x128xf32>,
    return
  }
  func.func @transform_0(%arg0: i32) -> (i32, i32) {
    %c0_i32 = arith.constant 0 : i32
    %c0_i32_0 = arith.constant 0 : i32
    return %arg0, %c0_i32 : i32, i32
  }
  func.func @transform_1(%arg0: i32) -> (i32, i32) {
    %c0_i32 = arith.constant 0 : i32
    %c0_i32_0 = arith.constant 0 : i32
    %c0_i32_1 = arith.constant 0 : i32
    return %c0_i32, %c0_i32_0 : i32, i32
  }
  func.func @transform_2(%arg0: i32) -> (i32, i32) {
    %c0_i32 = arith.constant 0 : i32
    %c0_i32_0 = arith.constant 0 : i32
    %c0_i32_1 = arith.constant 0 : i32
    return %c0_i32, %c0_i32_0 : i32, i32
  }
  func.func @transform_3(%arg0: i32) -> (i32, i32) {
    %c0_i32 = arith.constant 0 : i32
    %c0_i32_0 = arith.constant 0 : i32
    return %arg0, %c0_i32 : i32, i32
  }
}

</mosaic_0001>

<llo_original>
// kernel: base_conv_no_act.3
$region0: #{base_conv_no_act.3}
  #allocation0 [shape = 'u32[]', space=smem, size = 0x4, offset = 0x4, fixed_abs, tag = 'smem constant byte address 0x4 - core index']
  #allocation1 [shape = 'u32[144,128]{1,0:T(1,128)}', space=vmem, size = 0x12000, scoped, tag = 'internal scratch']
  %s0 = inlined_call_operand.vmem [shape: f32[512,128], index: 0, kind: input, shape index: {}]
  %s1 = inlined_call_operand.vmem [shape: f32[1,128], index: 1, kind: input, shape index: {}]
  %s2 = inlined_call_operand.vmem [shape: f32[1,128], index: 2, kind: input, shape index: {}]
  %s3 = inlined_call_operand.vmem [shape: f32[512,128], index: 3, kind: output, shape index: {}]
  %s4 = sld [smem:[#allocation0]]
  $region45: #{base_conv_no_act.3} parent=0
    _
  %s6 = ssub.s32 1, %s4
  %s7 = scalar_select 0, %s6, %s4
  loop: start=0, step=1, limit=4
  $region2: #{base_conv_no_act.3} parent=0 // loop_pre_header
    _
  $region3: #{base_conv_no_act.3} parent=0 // loop_header
    %s9 = sphi 0, %s13
    %p10 = scmp.ge.s32.totalorder %s9, 4
    %s19 = sphi 0, %s21
    %s22 = sphi 0, %s19
    %s23 = sphi 0, %s22
    %s39 = sphi 0, %s23
    %s43 = sphi 0, %s43
    %s45 = sphi 0, %s43
    %s46 = sphi 0, %s45
    %s60 = sphi 0, %s46
    %s64 = sphi 0, %s64
    %s66 = sphi 0, %s64
    %s67 = sphi 0, %s66
    %s81 = sphi 0, %s67
    %s87 = sphi 0, %s89
    %s90 = sphi 0, %s87
    %s91 = sphi 0, %s90
    %s107 = sphi 0, %s91
  $region4: #{base_conv_no_act.3} parent=0 // loop_header_branch
    %12 = sbr.rel (%p10) target = $region8
  $region5: #{base_conv_no_act.3} parent=0 // loop_body
    %s14 = ssub.s32 %s9, 1
    %s15 = ssub.s32 %s9, 2
    %s16 = sadd.s32 %s9, 1
    %s17 = ssub.s32 %s9, %s16
    %p18 = scmp.eq.s32.totalorder %s17, 0
    %s20 = sadd.s32 %s19, 1
    %s21 = scalar_select %p18, %s19, %s20
    %p24 = pneg %p18
    %p25 = scmp.eq.s32.totalorder %s9, 1
    %p26 = por %p24, %p25
    %p27 = scmp.ne.s32.totalorder %s19, %s22
    %p28 = scmp.eq.s32.totalorder %s9, 0
    %p29 = por %p27, %p28
    %p30 = scmp.ne.s32.totalorder %s19, %s22
    %p31 = scmp.eq.s32.totalorder %s14, 1
    %p32 = por %p30, %p31
    %p33 = scmp.ne.s32.totalorder %s22, %s23
    %p34 = scmp.eq.s32.totalorder %s14, 0
    %p35 = por %p33, %p34
    %p36 = scmp.ne.s32.totalorder %s22, %s23
    %p37 = scmp.eq.s32.totalorder %s15, 1
    %p38 = por %p36, %p37
    %p40 = scmp.ne.s32.totalorder %s23, %s39
    %p41 = scmp.eq.s32.totalorder %s15, 0
    %p42 = por %p40, %p41
    %s44 = sadd.s32 %s43, 1
    %p47 = scmp.eq.s32.totalorder %s9, 1
    %p48 = scmp.ne.s32.totalorder %s43, %s45
    %p49 = scmp.eq.s32.totalorder %s9, 0
    %p50 = por %p48, %p49
    %p51 = scmp.ne.s32.totalorder %s43, %s45
    %p52 = scmp.eq.s32.totalorder %s14, 1
    %p53 = por %p51, %p52
    %p54 = scmp.ne.s32.totalorder %s45, %s46
    %p55 = scmp.eq.s32.totalorder %s14, 0
    %p56 = por %p54, %p55
    %p57 = scmp.ne.s32.totalorder %s45, %s46
    %p58 = scmp.eq.s32.totalorder %s15, 1
    %p59 = por %p57, %p58
    %p61 = scmp.ne.s32.totalorder %s46, %s60
    %p62 = scmp.eq.s32.totalorder %s15, 0
    %p63 = por %p61, %p62
    %s65 = sadd.s32 %s64, 1
    %p68 = scmp.eq.s32.totalorder %s9, 1
    %p69 = scmp.ne.s32.totalorder %s64, %s66
    %p70 = scmp.eq.s32.totalorder %s9, 0
    %p71 = por %p69, %p70
    %p72 = scmp.ne.s32.totalorder %s64, %s66
    %p73 = scmp.eq.s32.totalorder %s14, 1
    %p74 = por %p72, %p73
    %p75 = scmp.ne.s32.totalorder %s66, %s67
    %p76 = scmp.eq.s32.totalorder %s14, 0
    %p77 = por %p75, %p76
    %p78 = scmp.ne.s32.totalorder %s66, %s67
    %p79 = scmp.eq.s32.totalorder %s15, 1
    %p80 = por %p78, %p79
    %p82 = scmp.ne.s32.totalorder %s67, %s81
    %p83 = scmp.eq.s32.totalorder %s15, 0
    %p84 = por %p82, %p83
    %s85 = ssub.s32 %s9, %s16
    %p86 = scmp.eq.s32.totalorder %s85, 0
    %s88 = sadd.s32 %s87, 1
    %s89 = scalar_select %p86, %s87, %s88
    %p92 = pneg %p86
    %p93 = scmp.eq.s32.totalorder %s9, 1
    %p94 = por %p92, %p93
    %p95 = scmp.ne.s32.totalorder %s87, %s90
    %p96 = scmp.eq.s32.totalorder %s9, 0
    %p97 = por %p95, %p96
    %p98 = scmp.ne.s32.totalorder %s87, %s90
    %p99 = scmp.eq.s32.totalorder %s14, 1
    %p100 = por %p98, %p99
    %p101 = scmp.ne.s32.totalorder %s90, %s91
    %p102 = scmp.eq.s32.totalorder %s14, 0
    %p103 = por %p101, %p102
    %p104 = scmp.ne.s32.totalorder %s90, %s91
    %p105 = scmp.eq.s32.totalorder %s15, 1
    %p106 = por %p104, %p105
    %p108 = scmp.ne.s32.totalorder %s91, %s107
    %p109 = scmp.eq.s32.totalorder %s15, 0
    %p110 = por %p108, %p109
    %p111 = scmp.le.s32.totalorder 1, %s9
    %p112 = scmp.lt.s32.totalorder %s9, 3
    %p113 = pnand %p111, %p112
    %p114 = pneg %p113
    // Predicated region
    $region9: #{base_conv_no_act.3} parent=5 // pred_check
      _
    $region10: #{base_conv_no_act.3} parent=5 // pred_check_branch
      %116 = sbr.rel (%p113) target = $region12
    $region11: #{base_conv_no_act.3} parent=5 // pred_region
      %s117 = ssub.s32 %s9, 1
      // Predicated region
      $region13: #{base_conv_no_act.3} parent=11 // pred_check
        %p118 = pneg %p56
      $region14: #{base_conv_no_act.3} parent=11 // pred_check_branch
        %120 = sbr.rel (%p118) target = $region16
      $region15: #{base_conv_no_act.3} parent=11 // pred_region
        _
      $region16: #{base_conv_no_act.3} parent=11 // pred_fallthru
        _
      // Predicated region
      $region17: #{base_conv_no_act.3} parent=11 // pred_check
        %p121 = pneg %p77
      $region18: #{base_conv_no_act.3} parent=11 // pred_check_branch
        %123 = sbr.rel (%p121) target = $region20
      $region19: #{base_conv_no_act.3} parent=11 // pred_region
        _
      $region20: #{base_conv_no_act.3} parent=11 // pred_fallthru
        _
    $region12: #{base_conv_no_act.3} parent=5 // pred_fallthru
      _
    %p124 = scmp.lt.s32.totalorder %s9, 2
    // Predicated region
    $region21: #{base_conv_no_act.3} parent=5 // pred_check
      %p125 = pneg %p124
    $region22: #{base_conv_no_act.3} parent=5 // pred_check_branch
      %127 = sbr.rel (%p125) target = $region24
    $region23: #{base_conv_no_act.3} parent=5 // pred_region
      // Predicated region
      $region25: #{base_conv_no_act.3} parent=23 // pred_check
        %p128 = pneg %p29
      $region26: #{base_conv_no_act.3} parent=23 // pred_check_branch
        %130 = sbr.rel (%p128) target = $region28
      $region27: #{base_conv_no_act.3} parent=23 // pred_region
        %s131 = smul.u32 32, %s9
        %p132 = scmp.lt.s32.totalorder %s131, 63
        %s133 = scalar_select %p132, %s131, 63
        %s134 = smul.addr %s133, 8
        %s135 = scalar_lea.vmem %s0, %s134
        %s136 = smul.u32 32, %s9
      $region28: #{base_conv_no_act.3} parent=23 // pred_fallthru
        _
    $region24: #{base_conv_no_act.3} parent=5 // pred_fallthru
      _
    %p137 = scmp.le.s32.totalorder 1, %s9
    %p138 = scmp.lt.s32.totalorder %s9, 3
    %p139 = pnand %p137, %p138
    %p140 = pneg %p139
    // Predicated region
    $region29: #{base_conv_no_act.3} parent=5 // pred_check
      _
    $region30: #{base_conv_no_act.3} parent=5 // pred_check_branch
      %142 = sbr.rel (%p139) target = $region32
    $region31: #{base_conv_no_act.3} parent=5 // pred_region
      %s143 = ssub.s32 %s9, 1
      %s144 = smul.u32 32, %s14
      %p145 = scmp.lt.s32.totalorder %s144, 63
      %s146 = scalar_select %p145, %s144, 63
      %s147 = smul.addr %s146, 8
      %s148 = scalar_lea.vmem %s0, %s147
      %p149 = pneg %p35
      %p150 = pneg %p32
      %p151 = pneg %p56
      %p152 = pneg %p53
      %p153 = pneg %p77
      %p154 = pneg %p74
      %p155 = pneg %p103
      %p156 = pneg %p100
      %s157 = smul.u32 32, %s14
      %p158 = scmp.lt.s32.totalorder %s157, 63
      %s159 = scalar_select %p158, %s157, 63
      %s160 = smul.addr %s159, 8
      %s161 = scalar_lea.vmem %s3, %s160
      %s162 = smul.u32 32, %s14
      %p163 = scmp.lt.s32.totalorder %s162, 63
      %s164 = scalar_select %p163, %s162, 63
      %s165 = smul.addr %s164, 8
      %s166 = scalar_lea.vmem %s0, %s165
      %s167 = smul.u32 32, %s14
      %s168 = smul.u32 32, %s14
      %p169 = scmp.lt.s32.totalorder %s168, 63
      %s170 = scalar_select %p169, %s168, 63
      %s171 = smul.addr %s170, 8
      %s172 = scalar_lea.vmem %s3, %s171
      %s173 = smul.u32 32, %s14
      %v174 = vld [vmem:[%s166] sm:$0xff]
      %v175 = vld [vmem:[%s166 + $0x8] sm:$0xff]
      %v176 = vld [vmem:[%s166 + $0x10] sm:$0xff]
      %v177 = vld [vmem:[%s166 + $0x18] sm:$0xff]
      %v178 = vld [vmem:[%s166 + $0x20] sm:$0xff]
      %v179 = vld [vmem:[%s166 + $0x28] sm:$0xff]
      %v180 = vld [vmem:[%s166 + $0x30] sm:$0xff]
      %v181 = vld [vmem:[%s166 + $0x38] sm:$0xff]
      %v182 = vld [vmem:[%s166 + $0x40] sm:$0xff]
      %v183 = vld [vmem:[%s166 + $0x48] sm:$0xff]
      %v184 = vld [vmem:[%s166 + $0x50] sm:$0xff]
      %v185 = vld [vmem:[%s166 + $0x58] sm:$0xff]
      %v186 = vld [vmem:[%s166 + $0x60] sm:$0xff]
      %v187 = vld [vmem:[%s166 + $0x68] sm:$0xff]
      %v188 = vld [vmem:[%s166 + $0x70] sm:$0xff]
      %v189 = vld [vmem:[%s166 + $0x78] sm:$0xff]
      %v190 = vld [vmem:[%s166 + $0x80] sm:$0xff]
      %v191 = vld [vmem:[%s166 + $0x88] sm:$0xff]
      %v192 = vld [vmem:[%s166 + $0x90] sm:$0xff]
      %v193 = vld [vmem:[%s166 + $0x98] sm:$0xff]
      %v194 = vld [vmem:[%s166 + $0xa0] sm:$0xff]
      %v195 = vld [vmem:[%s166 + $0xa8] sm:$0xff]
      %v196 = vld [vmem:[%s166 + $0xb0] sm:$0xff]
      %v197 = vld [vmem:[%s166 + $0xb8] sm:$0xff]
      %v198 = vld [vmem:[%s166 + $0xc0] sm:$0xff]
      %v199 = vld [vmem:[%s166 + $0xc8] sm:$0xff]
      %v200 = vld [vmem:[%s166 + $0xd0] sm:$0xff]
      %v201 = vld [vmem:[%s166 + $0xd8] sm:$0xff]
      %v202 = vld [vmem:[%s166 + $0xe0] sm:$0xff]
      %v203 = vld [vmem:[%s166 + $0xe8] sm:$0xff]
      %v204 = vld [vmem:[%s166 + $0xf0] sm:$0xff]
      %v205 = vld [vmem:[%s166 + $0xf8] sm:$0xff]
      %v206 = vld [vmem:[%s1] sm:$0x1]
      %v208 = vlaneseq
      %v209 = vshrl.u32 %v208, 7
      %v210 = vsub.s32 0, %v209
      %v211 = vrot.slane %v206, %v210
      %v213 = vmul.f32 %v174, %v211
      %v214 = vmul.f32 %v175, %v211
      %v215 = vmul.f32 %v176, %v211
      %v216 = vmul.f32 %v177, %v211
      %v217 = vmul.f32 %v178, %v211
      %v218 = vmul.f32 %v179, %v211
      %v219 = vmul.f32 %v180, %v211
      %v220 = vmul.f32 %v181, %v211
      %v221 = vmul.f32 %v182, %v211
      %v222 = vmul.f32 %v183, %v211
      %v223 = vmul.f32 %v184, %v211
      %v224 = vmul.f32 %v185, %v211
      %v225 = vmul.f32 %v186, %v211
      %v226 = vmul.f32 %v187, %v211
      %v227 = vmul.f32 %v188, %v211
      %v228 = vmul.f32 %v189, %v211
      %v229 = vmul.f32 %v190, %v211
      %v230 = vmul.f32 %v191, %v211
      %v231 = vmul.f32 %v192, %v211
      %v232 = vmul.f32 %v193, %v211
      %v233 = vmul.f32 %v194, %v211
      %v234 = vmul.f32 %v195, %v211
      %v235 = vmul.f32 %v196, %v211
      %v236 = vmul.f32 %v197, %v211
      %v237 = vmul.f32 %v198, %v211
      %v238 = vmul.f32 %v199, %v211
      %v239 = vmul.f32 %v200, %v211
      %v240 = vmul.f32 %v201, %v211
      %v241 = vmul.f32 %v202, %v211
      %v242 = vmul.f32 %v203, %v211
      %v243 = vmul.f32 %v204, %v211
      %v244 = vmul.f32 %v205, %v211
      %v245 = vld [vmem:[%s2] sm:$0x1]
      %v247 = vlaneseq
      %v248 = vshrl.u32 %v247, 7
      %v249 = vsub.s32 0, %v248
      %v250 = vrot.slane %v245, %v249
      %v252 = vadd.f32 %v213, %v250
      %v253 = vadd.f32 %v214, %v250
      %v254 = vadd.f32 %v215, %v250
      %v255 = vadd.f32 %v216, %v250
      %v256 = vadd.f32 %v217, %v250
      %v257 = vadd.f32 %v218, %v250
      %v258 = vadd.f32 %v219, %v250
      %v259 = vadd.f32 %v220, %v250
      %v260 = vadd.f32 %v221, %v250
      %v261 = vadd.f32 %v222, %v250
      %v262 = vadd.f32 %v223, %v250
      %v263 = vadd.f32 %v224, %v250
      %v264 = vadd.f32 %v225, %v250
      %v265 = vadd.f32 %v226, %v250
      %v266 = vadd.f32 %v227, %v250
      %v267 = vadd.f32 %v228, %v250
      %v268 = vadd.f32 %v229, %v250
      %v269 = vadd.f32 %v230, %v250
      %v270 = vadd.f32 %v231, %v250
      %v271 = vadd.f32 %v232, %v250
      %v272 = vadd.f32 %v233, %v250
      %v273 = vadd.f32 %v234, %v250
      %v274 = vadd.f32 %v235, %v250
      %v275 = vadd.f32 %v236, %v250
      %v276 = vadd.f32 %v237, %v250
      %v277 = vadd.f32 %v238, %v250
      %v278 = vadd.f32 %v239, %v250
      %v279 = vadd.f32 %v240, %v250
      %v280 = vadd.f32 %v241, %v250
      %v281 = vadd.f32 %v242, %v250
      %v282 = vadd.f32 %v243, %v250
      %v283 = vadd.f32 %v244, %v250
      %284 = vst [vmem:[%s172] sm:$0xff] %v252
      %285 = vst [vmem:[%s172 + $0x8] sm:$0xff] %v253
      %286 = vst [vmem:[%s172 + $0x10] sm:$0xff] %v254
      %287 = vst [vmem:[%s172 + $0x18] sm:$0xff] %v255
      %288 = vst [vmem:[%s172 + $0x20] sm:$0xff] %v256
      %289 = vst [vmem:[%s172 + $0x28] sm:$0xff] %v257
      %290 = vst [vmem:[%s172 + $0x30] sm:$0xff] %v258
      %291 = vst [vmem:[%s172 + $0x38] sm:$0xff] %v259
      %292 = vst [vmem:[%s172 + $0x40] sm:$0xff] %v260
      %293 = vst [vmem:[%s172 + $0x48] sm:$0xff] %v261
      %294 = vst [vmem:[%s172 + $0x50] sm:$0xff] %v262
      %295 = vst [vmem:[%s172 + $0x58] sm:$0xff] %v263
      %296 = vst [vmem:[%s172 + $0x60] sm:$0xff] %v264
      %297 = vst [vmem:[%s172 + $0x68] sm:$0xff] %v265
      %298 = vst [vmem:[%s172 + $0x70] sm:$0xff] %v266
      %299 = vst [vmem:[%s172 + $0x78] sm:$0xff] %v267
      %300 = vst [vmem:[%s172 + $0x80] sm:$0xff] %v268
      %301 = vst [vmem:[%s172 + $0x88] sm:$0xff] %v269
      %302 = vst [vmem:[%s172 + $0x90] sm:$0xff] %v270
      %303 = vst [vmem:[%s172 + $0x98] sm:$0xff] %v271
      %304 = vst [vmem:[%s172 + $0xa0] sm:$0xff] %v272
      %305 = vst [vmem:[%s172 + $0xa8] sm:$0xff] %v273
      %306 = vst [vmem:[%s172 + $0xb0] sm:$0xff] %v274
      %307 = vst [vmem:[%s172 + $0xb8] sm:$0xff] %v275
      %308 = vst [vmem:[%s172 + $0xc0] sm:$0xff] %v276
      %309 = vst [vmem:[%s172 + $0xc8] sm:$0xff] %v277
      %310 = vst [vmem:[%s172 + $0xd0] sm:$0xff] %v278
      %311 = vst [vmem:[%s172 + $0xd8] sm:$0xff] %v279
      %312 = vst [vmem:[%s172 + $0xe0] sm:$0xff] %v280
      %313 = vst [vmem:[%s172 + $0xe8] sm:$0xff] %v281
      %314 = vst [vmem:[%s172 + $0xf0] sm:$0xff] %v282
      %315 = vst [vmem:[%s172 + $0xf8] sm:$0xff] %v283
      %s316 = smul.u32 32, %s14
      %p317 = scmp.lt.s32.totalorder %s316, 63
      %s318 = scalar_select %p317, %s316, 63
      %s319 = smul.addr %s318, 8
      %s320 = scalar_lea.vmem %s3, %s319
      // Predicated region
      $region33: #{base_conv_no_act.3} parent=31 // pred_check
        %p321 = pneg %p100
      $region34: #{base_conv_no_act.3} parent=31 // pred_check_branch
        %323 = sbr.rel (%p321) target = $region36
      $region35: #{base_conv_no_act.3} parent=31 // pred_region
        %s324 = smul.u32 32, %s14
      $region36: #{base_conv_no_act.3} parent=31 // pred_fallthru
        _
    $region32: #{base_conv_no_act.3} parent=5 // pred_fallthru
      _
    %p325 = scmp.le.s32.totalorder 2, %s9
    // Predicated region
    $region37: #{base_conv_no_act.3} parent=5 // pred_check
      %p326 = pneg %p325
    $region38: #{base_conv_no_act.3} parent=5 // pred_check_branch
      %328 = sbr.rel (%p326) target = $region40
    $region39: #{base_conv_no_act.3} parent=5 // pred_region
      %s329 = ssub.s32 %s9, 2
      // Predicated region
      $region41: #{base_conv_no_act.3} parent=39 // pred_check
        %p330 = pneg %p106
      $region42: #{base_conv_no_act.3} parent=39 // pred_check_branch
        %332 = sbr.rel (%p330) target = $region44
      $region43: #{base_conv_no_act.3} parent=39 // pred_region
        %s333 = smul.u32 32, %s15
        %p334 = scmp.lt.s32.totalorder %s333, 63
        %s335 = scalar_select %p334, %s333, 63
        %s336 = smul.addr %s335, 8
        %s337 = scalar_lea.vmem %s3, %s336
      $region44: #{base_conv_no_act.3} parent=39 // pred_fallthru
        _
    $region40: #{base_conv_no_act.3} parent=5 // pred_fallthru
      _
  $region6: #{base_conv_no_act.3} parent=0 // loop_footer
    %s13 = sadd.s32 1, %s9
  $region7: #{base_conv_no_act.3} parent=0 // loop_footer_branch
    %8 = sbr.rel target = $region3
  $region8: #{base_conv_no_act.3} parent=0 // loop_exit
    _

// kernel: base_conv_no_act.2
$region0: #{base_conv_no_act.2}
  #allocation0 [shape = 'u32[]', space=smem, size = 0x4, offset = 0x4, fixed_abs, tag = 'smem constant byte address 0x4 - core index']
  #allocation1 [shape = 'u32[144,128]{1,0:T(1,128)}', space=vmem, size = 0x12000, scoped, tag = 'internal scratch']
  %s0 = inlined_call_operand.vmem [shape: f32[512,40], index: 0, kind: input, shape index: {}]
  %s1 = inlined_call_operand.vmem [shape: f32[40,128], index: 1, kind: input, shape index: {}]
  %s2 = inlined_call_operand.vmem [shape: f32[512,128], index: 2, kind: output, shape index: {0}]
  %s3 = inlined_call_operand.vmem [shape: f32[16,128], index: 3, kind: output, shape index: {1}]
  %s4 = inlined_call_operand.vmem [shape: f32[16,128], index: 4, kind: output, shape index: {2}]
  %5 = xla_tuple %s2, %s3, %s4
  %s6 = sld [smem:[#allocation0]]
  $region57: #{base_conv_no_act.2} parent=0
    _
  %s8 = ssub.s32 1, %s6
  %s9 = scalar_select 0, %s8, %s6
  loop: start=0, step=1, limit=4
  $region2: #{base_conv_no_act.2} parent=0 // loop_pre_header
    _
  $region3: #{base_conv_no_act.2} parent=0 // loop_header
    %s11 = sphi 0, %s15
    %p12 = scmp.ge.s32.totalorder %s11, 4
    %s21 = sphi 0, %s23
    %s24 = sphi 0, %s21
    %s25 = sphi 0, %s24
    %s41 = sphi 0, %s25
    %s45 = sphi 0, %s45
    %s47 = sphi 0, %s45
    %s48 = sphi 0, %s47
    %s62 = sphi 0, %s48
    %s68 = sphi 0, %s70
    %s71 = sphi 0, %s68
    %s72 = sphi 0, %s71
    %s88 = sphi 0, %s72
    %s94 = sphi 0, %s96
    %s97 = sphi 0, %s94
    %s98 = sphi 0, %s97
    %s114 = sphi 0, %s98
    %s120 = sphi 0, %s122
    %s123 = sphi 0, %s120
    %s124 = sphi 0, %s123
    %s140 = sphi 0, %s124
  $region4: #{base_conv_no_act.2} parent=0 // loop_header_branch
    %14 = sbr.rel (%p12) target = $region8
  $region5: #{base_conv_no_act.2} parent=0 // loop_body
    %s16 = ssub.s32 %s11, 1
    %s17 = ssub.s32 %s11, 2
    %s18 = sadd.s32 %s11, 1
    %s19 = ssub.s32 %s11, %s18
    %p20 = scmp.eq.s32.totalorder %s19, 0
    %s22 = sadd.s32 %s21, 1
    %s23 = scalar_select %p20, %s21, %s22
    %p26 = pneg %p20
    %p27 = scmp.eq.s32.totalorder %s11, 1
    %p28 = por %p26, %p27
    %p29 = scmp.ne.s32.totalorder %s21, %s24
    %p30 = scmp.eq.s32.totalorder %s11, 0
    %p31 = por %p29, %p30
    %p32 = scmp.ne.s32.totalorder %s21, %s24
    %p33 = scmp.eq.s32.totalorder %s16, 1
    %p34 = por %p32, %p33
    %p35 = scmp.ne.s32.totalorder %s24, %s25
    %p36 = scmp.eq.s32.totalorder %s16, 0
    %p37 = por %p35, %p36
    %p38 = scmp.ne.s32.totalorder %s24, %s25
    %p39 = scmp.eq.s32.totalorder %s17, 1
    %p40 = por %p38, %p39
    %p42 = scmp.ne.s32.totalorder %s25, %s41
    %p43 = scmp.eq.s32.totalorder %s17, 0
    %p44 = por %p42, %p43
    %s46 = sadd.s32 %s45, 1
    %p49 = scmp.eq.s32.totalorder %s11, 1
    %p50 = scmp.ne.s32.totalorder %s45, %s47
    %p51 = scmp.eq.s32.totalorder %s11, 0
    %p52 = por %p50, %p51
    %p53 = scmp.ne.s32.totalorder %s45, %s47
    %p54 = scmp.eq.s32.totalorder %s16, 1
    %p55 = por %p53, %p54
    %p56 = scmp.ne.s32.totalorder %s47, %s48
    %p57 = scmp.eq.s32.totalorder %s16, 0
    %p58 = por %p56, %p57
    %p59 = scmp.ne.s32.totalorder %s47, %s48
    %p60 = scmp.eq.s32.totalorder %s17, 1
    %p61 = por %p59, %p60
    %p63 = scmp.ne.s32.totalorder %s48, %s62
    %p64 = scmp.eq.s32.totalorder %s17, 0
    %p65 = por %p63, %p64
    %s66 = ssub.s32 %s11, %s18
    %p67 = scmp.eq.s32.totalorder %s66, 0
    %s69 = sadd.s32 %s68, 1
    %s70 = scalar_select %p67, %s68, %s69
    %p73 = pneg %p67
    %p74 = scmp.eq.s32.totalorder %s11, 1
    %p75 = por %p73, %p74
    %p76 = scmp.ne.s32.totalorder %s68, %s71
    %p77 = scmp.eq.s32.totalorder %s11, 0
    %p78 = por %p76, %p77
    %p79 = scmp.ne.s32.totalorder %s68, %s71
    %p80 = scmp.eq.s32.totalorder %s16, 1
    %p81 = por %p79, %p80
    %p82 = scmp.ne.s32.totalorder %s71, %s72
    %p83 = scmp.eq.s32.totalorder %s16, 0
    %p84 = por %p82, %p83
    %p85 = scmp.ne.s32.totalorder %s71, %s72
    %p86 = scmp.eq.s32.totalorder %s17, 1
    %p87 = por %p85, %p86
    %p89 = scmp.ne.s32.totalorder %s72, %s88
    %p90 = scmp.eq.s32.totalorder %s17, 0
    %p91 = por %p89, %p90
    %s92 = ssub.s32 %s11, %s18
    %p93 = scmp.eq.s32.totalorder %s92, 0
    %s95 = sadd.s32 %s94, 1
    %s96 = scalar_select %p93, %s94, %s95
    %p99 = pneg %p93
    %p100 = scmp.eq.s32.totalorder %s11, 1
    %p101 = por %p99, %p100
    %p102 = scmp.ne.s32.totalorder %s94, %s97
    %p103 = scmp.eq.s32.totalorder %s11, 0
    %p104 = por %p102, %p103
    %p105 = scmp.ne.s32.totalorder %s94, %s97
    %p106 = scmp.eq.s32.totalorder %s16, 1
    %p107 = por %p105, %p106
    %p108 = scmp.ne.s32.totalorder %s97, %s98
    %p109 = scmp.eq.s32.totalorder %s16, 0
    %p110 = por %p108, %p109
    %p111 = scmp.ne.s32.totalorder %s97, %s98
    %p112 = scmp.eq.s32.totalorder %s17, 1
    %p113 = por %p111, %p112
    %p115 = scmp.ne.s32.totalorder %s98, %s114
    %p116 = scmp.eq.s32.totalorder %s17, 0
    %p117 = por %p115, %p116
    %s118 = ssub.s32 %s11, %s18
    %p119 = scmp.eq.s32.totalorder %s118, 0
    %s121 = sadd.s32 %s120, 1
    %s122 = scalar_select %p119, %s120, %s121
    %p125 = pneg %p119
    %p126 = scmp.eq.s32.totalorder %s11, 1
    %p127 = por %p125, %p126
    %p128 = scmp.ne.s32.totalorder %s120, %s123
    %p129 = scmp.eq.s32.totalorder %s11, 0
    %p130 = por %p128, %p129
    %p131 = scmp.ne.s32.totalorder %s120, %s123
    %p132 = scmp.eq.s32.totalorder %s16, 1
    %p133 = por %p131, %p132
    %p134 = scmp.ne.s32.totalorder %s123, %s124
    %p135 = scmp.eq.s32.totalorder %s16, 0
    %p136 = por %p134, %p135
    %p137 = scmp.ne.s32.totalorder %s123, %s124
    %p138 = scmp.eq.s32.totalorder %s17, 1
    %p139 = por %p137, %p138
    %p141 = scmp.ne.s32.totalorder %s124, %s140
    %p142 = scmp.eq.s32.totalorder %s17, 0
    %p143 = por %p141, %p142
    %p144 = scmp.le.s32.totalorder 1, %s11
    %p145 = scmp.lt.s32.totalorder %s11, 3
    %p146 = pnand %p144, %p145
    %p147 = pneg %p146
    // Predicated region
    $region9: #{base_conv_no_act.2} parent=5 // pred_check
      _
    $region10: #{base_conv_no_act.2} parent=5 // pred_check_branch
      %149 = sbr.rel (%p146) target = $region12
    $region11: #{base_conv_no_act.2} parent=5 // pred_region
      %s150 = ssub.s32 %s11, 1
      // Predicated region
      $region13: #{base_conv_no_act.2} parent=11 // pred_check
        %p151 = pneg %p58
      $region14: #{base_conv_no_act.2} parent=11 // pred_check_branch
        %153 = sbr.rel (%p151) target = $region16
      $region15: #{base_conv_no_act.2} parent=11 // pred_region
        _
      $region16: #{base_conv_no_act.2} parent=11 // pred_fallthru
        _
    $region12: #{base_conv_no_act.2} parent=5 // pred_fallthru
      _
    %p154 = scmp.lt.s32.totalorder %s11, 2
    // Predicated region
    $region17: #{base_conv_no_act.2} parent=5 // pred_check
      %p155 = pneg %p154
    $region18: #{base_conv_no_act.2} parent=5 // pred_check_branch
      %157 = sbr.rel (%p155) target = $region20
    $region19: #{base_conv_no_act.2} parent=5 // pred_region
      // Predicated region
      $region21: #{base_conv_no_act.2} parent=19 // pred_check
        %p158 = pneg %p31
      $region22: #{base_conv_no_act.2} parent=19 // pred_check_branch
        %160 = sbr.rel (%p158) target = $region24
      $region23: #{base_conv_no_act.2} parent=19 // pred_region
        %s161 = smul.u32 32, %s11
        %p162 = scmp.lt.s32.totalorder %s161, 63
        %s163 = scalar_select %p162, %s161, 63
        %s164 = smul.addr %s163, 8
        %s165 = scalar_lea.vmem %s0, %s164
        %s166 = smul.u32 32, %s11
      $region24: #{base_conv_no_act.2} parent=19 // pred_fallthru
        _
    $region20: #{base_conv_no_act.2} parent=5 // pred_fallthru
      _
    %p167 = scmp.le.s32.totalorder 1, %s11
    %p168 = scmp.lt.s32.totalorder %s11, 3
    %p169 = pnand %p167, %p168
    %p170 = pneg %p169
    // Predicated region
    $region25: #{base_conv_no_act.2} parent=5 // pred_check
      _
    $region26: #{base_conv_no_act.2} parent=5 // pred_check_branch
      %172 = sbr.rel (%p169) target = $region28
    $region27: #{base_conv_no_act.2} parent=5 // pred_region
      %s173 = ssub.s32 %s11, 1
      %s174 = smul.u32 32, %s16
      %p175 = scmp.lt.s32.totalorder %s174, 63
      %s176 = scalar_select %p175, %s174, 63
      %s177 = smul.addr %s176, 8
      %s178 = scalar_lea.vmem %s0, %s177
      %p179 = pneg %p37
      %p180 = pneg %p34
      %p181 = pneg %p58
      %p182 = pneg %p55
      %p183 = pneg %p84
      %p184 = pneg %p81
      %s185 = smul.u32 32, %s16
      %p186 = scmp.lt.s32.totalorder %s185, 63
      %s187 = scalar_select %p186, %s185, 63
      %s188 = smul.addr %s187, 8
      %s189 = scalar_lea.vmem %s2, %s188
      %p190 = pneg %p110
      %p191 = pneg %p107
      %p192 = scmp.lt.s32.totalorder %s16, 1
      %s193 = scalar_select %p192, %s16, 1
      %s194 = smul.addr %s193, 8
      %s195 = scalar_lea.vmem %s3, %s194
      %p196 = pneg %p136
      %p197 = pneg %p133
      %p198 = scmp.lt.s32.totalorder %s16, 1
      %s199 = scalar_select %p198, %s16, 1
      %s200 = smul.addr %s199, 8
      %s201 = scalar_lea.vmem %s4, %s200
      %s202 = smul.u32 32, %s16
      %p203 = scmp.lt.s32.totalorder %s202, 63
      %s204 = scalar_select %p203, %s202, 63
      %s205 = smul.addr %s204, 8
      %s206 = scalar_lea.vmem %s0, %s205
      %s207 = smul.u32 32, %s16
      %s208 = smul.u32 32, %s16
      %p209 = scmp.lt.s32.totalorder %s208, 63
      %s210 = scalar_select %p209, %s208, 63
      %s211 = smul.addr %s210, 8
      %s212 = scalar_lea.vmem %s2, %s211
      %s213 = smul.u32 32, %s16
      %p214 = scmp.lt.s32.totalorder %s16, 1
      %s215 = scalar_select %p214, %s16, 1
      %s216 = smul.addr %s215, 8
      %s217 = scalar_lea.vmem %s3, %s216
      %p218 = scmp.lt.s32.totalorder %s16, 1
      %s219 = scalar_select %p218, %s16, 1
      %s220 = smul.addr %s219, 8
      %s221 = scalar_lea.vmem %s4, %s220
      %v222 = vld [vmem:[%s206] sm:$0xff]
      %v223 = vld [vmem:[%s206 + $0x8] sm:$0xff]
      %v224 = vld [vmem:[%s206 + $0x10] sm:$0xff]
      %v225 = vld [vmem:[%s206 + $0x18] sm:$0xff]
      %v226 = vld [vmem:[%s206 + $0x20] sm:$0xff]
      %v227 = vld [vmem:[%s206 + $0x28] sm:$0xff]
      %v228 = vld [vmem:[%s206 + $0x30] sm:$0xff]
      %v229 = vld [vmem:[%s206 + $0x38] sm:$0xff]
      %v230 = vld [vmem:[%s206 + $0x40] sm:$0xff]
      %v231 = vld [vmem:[%s206 + $0x48] sm:$0xff]
      %v232 = vld [vmem:[%s206 + $0x50] sm:$0xff]
      %v233 = vld [vmem:[%s206 + $0x58] sm:$0xff]
      %v234 = vld [vmem:[%s206 + $0x60] sm:$0xff]
      %v235 = vld [vmem:[%s206 + $0x68] sm:$0xff]
      %v236 = vld [vmem:[%s206 + $0x70] sm:$0xff]
      %v237 = vld [vmem:[%s206 + $0x78] sm:$0xff]
      %v238 = vld [vmem:[%s206 + $0x80] sm:$0xff]
      %v239 = vld [vmem:[%s206 + $0x88] sm:$0xff]
      %v240 = vld [vmem:[%s206 + $0x90] sm:$0xff]
      %v241 = vld [vmem:[%s206 + $0x98] sm:$0xff]
      %v242 = vld [vmem:[%s206 + $0xa0] sm:$0xff]
      %v243 = vld [vmem:[%s206 + $0xa8] sm:$0xff]
      %v244 = vld [vmem:[%s206 + $0xb0] sm:$0xff]
      %v245 = vld [vmem:[%s206 + $0xb8] sm:$0xff]
      %v246 = vld [vmem:[%s206 + $0xc0] sm:$0xff]
      %v247 = vld [vmem:[%s206 + $0xc8] sm:$0xff]
      %v248 = vld [vmem:[%s206 + $0xd0] sm:$0xff]
      %v249 = vld [vmem:[%s206 + $0xd8] sm:$0xff]
      %v250 = vld [vmem:[%s206 + $0xe0] sm:$0xff]
      %v251 = vld [vmem:[%s206 + $0xe8] sm:$0xff]
      %v252 = vld [vmem:[%s206 + $0xf0] sm:$0xff]
      %v253 = vld [vmem:[%s206 + $0xf8] sm:$0xff]
      %v254 = vld [vmem:[%s1] sm:$0xff]
      %v255 = vld [vmem:[%s1 + $0x8] sm:$0xff]
      %v256 = vld [vmem:[%s1 + $0x10] sm:$0xff]
      %v257 = vld [vmem:[%s1 + $0x18] sm:$0xff]
      %v258 = vld [vmem:[%s1 + $0x20] sm:$0xff]
      %vm259 = vcmask 326656
      %v261 = vsel %vm259, %v222, 0
      %v264 = vsel %vm259, %v223, 0
      %v267 = vsel %vm259, %v224, 0
      %v270 = vsel %vm259, %v225, 0
      %v273 = vsel %vm259, %v226, 0
      %v276 = vsel %vm259, %v227, 0
      %v279 = vsel %vm259, %v228, 0
      %v282 = vsel %vm259, %v229, 0
      %v285 = vsel %vm259, %v230, 0
      %v288 = vsel %vm259, %v231, 0
      %v291 = vsel %vm259, %v232, 0
      %v294 = vsel %vm259, %v233, 0
      %v297 = vsel %vm259, %v234, 0
      %v300 = vsel %vm259, %v235, 0
      %v303 = vsel %vm259, %v236, 0
      %v306 = vsel %vm259, %v237, 0
      %v309 = vsel %vm259, %v238, 0
      %v312 = vsel %vm259, %v239, 0
      %v315 = vsel %vm259, %v240, 0
      %v318 = vsel %vm259, %v241, 0
      %v321 = vsel %vm259, %v242, 0
      %v324 = vsel %vm259, %v243, 0
      %v327 = vsel %vm259, %v244, 0
      %v330 = vsel %vm259, %v245, 0
      %v333 = vsel %vm259, %v246, 0
      %v336 = vsel %vm259, %v247, 0
      %v339 = vsel %vm259, %v248, 0
      %v342 = vsel %vm259, %v249, 0
      %v345 = vsel %vm259, %v250, 0
      %v348 = vsel %vm259, %v251, 0
      %v351 = vsel %vm259, %v252, 0
      %v354 = vsel %vm259, %v253, 0
      %356 = vmatprep.subr.mxu0 0.0
      %357 = vmatpush1.msra.mxu0 %v254
      %358 = vmatprep.subr.mxu0 0.0
      %359 = vmatpush1.msra.mxu0 %v255
      %360 = vmatprep.subr.mxu0 0.0
      %361 = vmatpush1.msra.mxu0 %v256
      %362 = vmatprep.subr.mxu0 0.0
      %363 = vmatpush1.msra.mxu0 %v257
      %364 = vmatprep.subr.mxu0 0.0
      %365 = vmatpush1.msra.mxu0 %v258
      %366 = vmatprep.subr.mxu0 0.0
      %367 = vmatpush1.msra.mxu0 0.0
      %368 = vmatprep.subr.mxu0 0.0
      %369 = vmatpush1.msra.mxu0 0.0
      %370 = vmatprep.subr.mxu0 0.0
      %371 = vmatpush1.msra.mxu0 0.0
      %372 = vmatprep.subr.mxu0 0.0
      %373 = vmatpush1.msra.mxu0 0.0
      %374 = vmatprep.subr.mxu0 0.0
      %375 = vmatpush1.msra.mxu0 0.0
      %376 = vmatprep.subr.mxu0 0.0
      %377 = vmatpush1.msra.mxu0 0.0
      %378 = vmatprep.subr.mxu0 0.0
      %379 = vmatpush1.msra.mxu0 0.0
      %380 = vmatprep.subr.mxu0 0.0
      %381 = vmatpush1.msra.mxu0 0.0
      %382 = vmatprep.subr.mxu0 0.0
      %383 = vmatpush1.msra.mxu0 0.0
      %384 = vmatprep.subr.mxu0 0.0
      %385 = vmatpush1.msra.mxu0 0.0
      %386 = vmatprep.subr.mxu0 0.0
      %387 = vmatpush1.msra.mxu0 0.0
      %388 = vmatprep.subr.mxu0 0.0
      %389 = vmatpush1.msra.mxu0 0.0
      %390 = vmatprep.subr.mxu0 0.0
      %391 = vmatpush1.msra.mxu0 0.0
      %392 = vmatprep.subr.mxu0 0.0
      %393 = vmatpush1.msra.mxu0 0.0
      %394 = vmatprep.subr.mxu0 0.0
      %395 = vmatpush1.msra.mxu0 0.0
      %396 = vmatprep.subr.mxu0 0.0
      %397 = vmatpush1.msra.mxu0 0.0
      %398 = vmatprep.subr.mxu0 0.0
      %399 = vmatpush1.msra.mxu0 0.0
      %400 = vmatprep.subr.mxu0 0.0
      %401 = vmatpush1.msra.mxu0 0.0
      %402 = vmatprep.subr.mxu0 0.0
      %403 = vmatpush1.msra.mxu0 0.0
      %404 = vmatprep.subr.mxu0 0.0
      %405 = vmatpush1.msra.mxu0 0.0
      %406 = vmatprep.subr.mxu0 0.0
      %407 = vmatpush1.msra.mxu0 0.0
      %408 = vmatprep.subr.mxu0 0.0
      %409 = vmatpush1.msra.mxu0 0.0
      %410 = vmatprep.subr.mxu0 0.0
      %411 = vmatpush1.msra.mxu0 0.0
      %412 = vmatprep.subr.mxu0 0.0
      %413 = vmatpush1.msra.mxu0 0.0
      %414 = vmatprep.subr.mxu0 0.0
      %415 = vmatpush1.msra.mxu0 0.0
      %416 = vmatprep.subr.mxu0 0.0
      %417 = vmatpush1.msra.mxu0 0.0
      %418 = vmatprep.subr.mxu0 0.0
      %419 = vmatpush1.msra.mxu0 0.0
      %420 = vmatprep.mubr.f32.mxu0 0.0
      %421 = vmatmul.mubr.f32.gmra.mrb[0].mxu0 %v261
      %v422 = vpop.f32.mrb[0].mxu0
      %v423 = vadd.f32 0.0, %v422
      %v424 = vpop.f32.mrb[0].mxu0
      %425 = vmatprep.mubr.f32.mxu0 0.0
      %426 = vmatmul.mubr.f32.gmra.mrb[0].mxu0 %v264
      %v427 = vpop.f32.mrb[0].mxu0
      %v428 = vadd.f32 0.0, %v427
      %v429 = vpop.f32.mrb[0].mxu0
      %430 = vmatprep.mubr.f32.mxu0 0.0
      %431 = vmatmul.mubr.f32.gmra.mrb[0].mxu0 %v267
      %v432 = vpop.f32.mrb[0].mxu0
      %v433 = vadd.f32 0.0, %v432
      %v434 = vpop.f32.mrb[0].mxu0
      %435 = vmatprep.mubr.f32.mxu0 0.0
      %436 = vmatmul.mubr.f32.gmra.mrb[0].mxu0 %v270
      %v437 = vpop.f32.mrb[0].mxu0
      %v438 = vadd.f32 0.0, %v437
      %v439 = vpop.f32.mrb[0].mxu0
      %440 = vmatprep.mubr.f32.mxu0 0.0
      %441 = vmatmul.mubr.f32.gmra.mrb[0].mxu0 %v273
      %v442 = vpop.f32.mrb[0].mxu0
      %v443 = vadd.f32 0.0, %v442
      %v444 = vpop.f32.mrb[0].mxu0
      %445 = vmatprep.mubr.f32.mxu0 0.0
      %446 = vmatmul.mubr.f32.gmra.mrb[0].mxu0 %v276
      %v447 = vpop.f32.mrb[0].mxu0
      %v448 = vadd.f32 0.0, %v447
      %v449 = vpop.f32.mrb[0].mxu0
      %450 = vmatprep.mubr.f32.mxu0 0.0
      %451 = vmatmul.mubr.f32.gmra.mrb[0].mxu0 %v279
      %v452 = vpop.f32.mrb[0].mxu0
      %v453 = vadd.f32 0.0, %v452
      %v454 = vpop.f32.mrb[0].mxu0
      %455 = vmatprep.mubr.f32.mxu0 0.0
      %456 = vmatmul.mubr.f32.gmra.mrb[0].mxu0 %v282
      %v457 = vpop.f32.mrb[0].mxu0
      %v458 = vadd.f32 0.0, %v457
      %v459 = vpop.f32.mrb[0].mxu0
      %460 = vmatprep.mubr.f32.mxu0 0.0
      %461 = vmatmul.mubr.f32.gmra.mrb[0].mxu0 %v285
      %v462 = vpop.f32.mrb[0].mxu0
      %v463 = vadd.f32 0.0, %v462
      %v464 = vpop.f32.mrb[0].mxu0
      %465 = vmatprep.mubr.f32.mxu0 0.0
      %466 = vmatmul.mubr.f32.gmra.mrb[0].mxu0 %v288
      %v467 = vpop.f32.mrb[0].mxu0
      %v468 = vadd.f32 0.0, %v467
      %v469 = vpop.f32.mrb[0].mxu0
      %470 = vmatprep.mubr.f32.mxu0 0.0
      %471 = vmatmul.mubr.f32.gmra.mrb[0].mxu0 %v291
      %v472 = vpop.f32.mrb[0].mxu0
      %v473 = vadd.f32 0.0, %v472
      %v474 = vpop.f32.mrb[0].mxu0
      %475 = vmatprep.mubr.f32.mxu0 0.0
      %476 = vmatmul.mubr.f32.gmra.mrb[0].mxu0 %v294
      %v477 = vpop.f32.mrb[0].mxu0
      %v478 = vadd.f32 0.0, %v477
      %v479 = vpop.f32.mrb[0].mxu0
      %480 = vmatprep.mubr.f32.mxu0 0.0
      %481 = vmatmul.mubr.f32.gmra.mrb[0].mxu0 %v297
      %v482 = vpop.f32.mrb[0].mxu0
      %v483 = vadd.f32 0.0, %v482
      %v484 = vpop.f32.mrb[0].mxu0
      %485 = vmatprep.mubr.f32.mxu0 0.0
      %486 = vmatmul.mubr.f32.gmra.mrb[0].mxu0 %v300
      %v487 = vpop.f32.mrb[0].mxu0
      %v488 = vadd.f32 0.0, %v487
      %v489 = vpop.f32.mrb[0].mxu0
      %490 = vmatprep.mubr.f32.mxu0 0.0
      %491 = vmatmul.mubr.f32.gmra.mrb[0].mxu0 %v303
      %v492 = vpop.f32.mrb[0].mxu0
      %v493 = vadd.f32 0.0, %v492
      %v494 = vpop.f32.mrb[0].mxu0
      %495 = vmatprep.mubr.f32.mxu0 0.0
      %496 = vmatmul.mubr.f32.gmra.mrb[0].mxu0 %v306
      %v497 = vpop.f32.mrb[0].mxu0
      %v498 = vadd.f32 0.0, %v497
      %v499 = vpop.f32.mrb[0].mxu0
      %500 = vmatprep.mubr.f32.mxu0 0.0
      %501 = vmatmul.mubr.f32.gmra.mrb[0].mxu0 %v309
      %v502 = vpop.f32.mrb[0].mxu0
      %v503 = vadd.f32 0.0, %v502
      %v504 = vpop.f32.mrb[0].mxu0
      %505 = vmatprep.mubr.f32.mxu0 0.0
      %506 = vmatmul.mubr.f32.gmra.mrb[0].mxu0 %v312
      %v507 = vpop.f32.mrb[0].mxu0
      %v508 = vadd.f32 0.0, %v507
      %v509 = vpop.f32.mrb[0].mxu0
      %510 = vmatprep.mubr.f32.mxu0 0.0
      %511 = vmatmul.mubr.f32.gmra.mrb[0].mxu0 %v315
      %v512 = vpop.f32.mrb[0].mxu0
      %v513 = vadd.f32 0.0, %v512
      %v514 = vpop.f32.mrb[0].mxu0
      %515 = vmatprep.mubr.f32.mxu0 0.0
      %516 = vmatmul.mubr.f32.gmra.mrb[0].mxu0 %v318
      %v517 = vpop.f32.mrb[0].mxu0
      %v518 = vadd.f32 0.0, %v517
      %v519 = vpop.f32.mrb[0].mxu0
      %520 = vmatprep.mubr.f32.mxu0 0.0
      %521 = vmatmul.mubr.f32.gmra.mrb[0].mxu0 %v321
      %v522 = vpop.f32.mrb[0].mxu0
      %v523 = vadd.f32 0.0, %v522
      %v524 = vpop.f32.mrb[0].mxu0
      %525 = vmatprep.mubr.f32.mxu0 0.0
      %526 = vmatmul.mubr.f32.gmra.mrb[0].mxu0 %v324
      %v527 = vpop.f32.mrb[0].mxu0
      %v528 = vadd.f32 0.0, %v527
      %v529 = vpop.f32.mrb[0].mxu0
      %530 = vmatprep.mubr.f32.mxu0 0.0
      %531 = vmatmul.mubr.f32.gmra.mrb[0].mxu0 %v327
      %v532 = vpop.f32.mrb[0].mxu0
      %v533 = vadd.f32 0.0, %v532
      %v534 = vpop.f32.mrb[0].mxu0
      %535 = vmatprep.mubr.f32.mxu0 0.0
      %536 = vmatmul.mubr.f32.gmra.mrb[0].mxu0 %v330
      %v537 = vpop.f32.mrb[0].mxu0
      %v538 = vadd.f32 0.0, %v537
      %v539 = vpop.f32.mrb[0].mxu0
      %540 = vmatprep.mubr.f32.mxu0 0.0
      %541 = vmatmul.mubr.f32.gmra.mrb[0].mxu0 %v333
      %v542 = vpop.f32.mrb[0].mxu0
      %v543 = vadd.f32 0.0, %v542
      %v544 = vpop.f32.mrb[0].mxu0
      %545 = vmatprep.mubr.f32.mxu0 0.0
      %546 = vmatmul.mubr.f32.gmra.mrb[0].mxu0 %v336
      %v547 = vpop.f32.mrb[0].mxu0
      %v548 = vadd.f32 0.0, %v547
      %v549 = vpop.f32.mrb[0].mxu0
      %550 = vmatprep.mubr.f32.mxu0 0.0
      %551 = vmatmul.mubr.f32.gmra.mrb[0].mxu0 %v339
      %v552 = vpop.f32.mrb[0].mxu0
      %v553 = vadd.f32 0.0, %v552
      %v554 = vpop.f32.mrb[0].mxu0
      %555 = vmatprep.mubr.f32.mxu0 0.0
      %556 = vmatmul.mubr.f32.gmra.mrb[0].mxu0 %v342
      %v557 = vpop.f32.mrb[0].mxu0
      %v558 = vadd.f32 0.0, %v557
      %v559 = vpop.f32.mrb[0].mxu0
      %560 = vmatprep.mubr.f32.mxu0 0.0
      %561 = vmatmul.mubr.f32.gmra.mrb[0].mxu0 %v345
      %v562 = vpop.f32.mrb[0].mxu0
      %v563 = vadd.f32 0.0, %v562
      %v564 = vpop.f32.mrb[0].mxu0
      %565 = vmatprep.mubr.f32.mxu0 0.0
      %566 = vmatmul.mubr.f32.gmra.mrb[0].mxu0 %v348
      %v567 = vpop.f32.mrb[0].mxu0
      %v568 = vadd.f32 0.0, %v567
      %v569 = vpop.f32.mrb[0].mxu0
      %570 = vmatprep.mubr.f32.mxu0 0.0
      %571 = vmatmul.mubr.f32.gmra.mrb[0].mxu0 %v351
      %v572 = vpop.f32.mrb[0].mxu0
      %v573 = vadd.f32 0.0, %v572
      %v574 = vpop.f32.mrb[0].mxu0
      %575 = vmatprep.mubr.f32.mxu0 0.0
      %576 = vmatmul.mubr.f32.gmra.mrb[0].mxu0 %v354
      %v577 = vpop.f32.mrb[0].mxu0
      %v578 = vadd.f32 0.0, %v577
      %v579 = vpop.f32.mrb[0].mxu0
      %580 = vdwg.mxu0
      %581 = vst [vmem:[%s212] sm:$0xff] %v423
      %582 = vst [vmem:[%s212 + $0x8] sm:$0xff] %v428
      %583 = vst [vmem:[%s212 + $0x10] sm:$0xff] %v433
      %584 = vst [vmem:[%s212 + $0x18] sm:$0xff] %v438
      %585 = vst [vmem:[%s212 + $0x20] sm:$0xff] %v443
      %586 = vst [vmem:[%s212 + $0x28] sm:$0xff] %v448
      %587 = vst [vmem:[%s212 + $0x30] sm:$0xff] %v453
      %588 = vst [vmem:[%s212 + $0x38] sm:$0xff] %v458
      %589 = vst [vmem:[%s212 + $0x40] sm:$0xff] %v463
      %590 = vst [vmem:[%s212 + $0x48] sm:$0xff] %v468
      %591 = vst [vmem:[%s212 + $0x50] sm:$0xff] %v473
      %592 = vst [vmem:[%s212 + $0x58] sm:$0xff] %v478
      %593 = vst [vmem:[%s212 + $0x60] sm:$0xff] %v483
      %594 = vst [vmem:[%s212 + $0x68] sm:$0xff] %v488
      %595 = vst [vmem:[%s212 + $0x70] sm:$0xff] %v493
      %596 = vst [vmem:[%s212 + $0x78] sm:$0xff] %v498
      %597 = vst [vmem:[%s212 + $0x80] sm:$0xff] %v503
      %598 = vst [vmem:[%s212 + $0x88] sm:$0xff] %v508
      %599 = vst [vmem:[%s212 + $0x90] sm:$0xff] %v513
      %600 = vst [vmem:[%s212 + $0x98] sm:$0xff] %v518
      %601 = vst [vmem:[%s212 + $0xa0] sm:$0xff] %v523
      %602 = vst [vmem:[%s212 + $0xa8] sm:$0xff] %v528
      %603 = vst [vmem:[%s212 + $0xb0] sm:$0xff] %v533
      %604 = vst [vmem:[%s212 + $0xb8] sm:$0xff] %v538
      %605 = vst [vmem:[%s212 + $0xc0] sm:$0xff] %v543
      %606 = vst [vmem:[%s212 + $0xc8] sm:$0xff] %v548
      %607 = vst [vmem:[%s212 + $0xd0] sm:$0xff] %v553
      %608 = vst [vmem:[%s212 + $0xd8] sm:$0xff] %v558
      %609 = vst [vmem:[%s212 + $0xe0] sm:$0xff] %v563
      %610 = vst [vmem:[%s212 + $0xe8] sm:$0xff] %v568
      %611 = vst [vmem:[%s212 + $0xf0] sm:$0xff] %v573
      %612 = vst [vmem:[%s212 + $0xf8] sm:$0xff] %v578
      %v613 = vadd.f32 %v423, %v428
      %v614 = vadd.f32 %v613, %v433
      %v615 = vadd.f32 %v614, %v438
      %v616 = vadd.f32 %v615, %v443
      %v617 = vadd.f32 %v616, %v448
      %v618 = vadd.f32 %v617, %v453
      %v619 = vadd.f32 %v618, %v458
      %v620 = vadd.f32 %v619, %v463
      %v621 = vadd.f32 %v620, %v468
      %v622 = vadd.f32 %v621, %v473
      %v623 = vadd.f32 %v622, %v478
      %v624 = vadd.f32 %v623, %v483
      %v625 = vadd.f32 %v624, %v488
      %v626 = vadd.f32 %v625, %v493
      %v627 = vadd.f32 %v626, %v498
      %v628 = vadd.f32 %v627, %v503
      %v629 = vadd.f32 %v628, %v508
      %v630 = vadd.f32 %v629, %v513
      %v631 = vadd.f32 %v630, %v518
      %v632 = vadd.f32 %v631, %v523
      %v633 = vadd.f32 %v632, %v528
      %v634 = vadd.f32 %v633, %v533
      %v635 = vadd.f32 %v634, %v538
      %v636 = vadd.f32 %v635, %v543
      %v637 = vadd.f32 %v636, %v548
      %v638 = vadd.f32 %v637, %v553
      %v639 = vadd.f32 %v638, %v558
      %v640 = vadd.f32 %v639, %v563
      %v641 = vadd.f32 %v640, %v568
      %v642 = vadd.f32 %v641, %v573
      %v643 = vadd.f32 %v642, %v578
      %644 = vst [vmem:[%s217] sm:$0xff] %v643
      %v645 = vmul.f32 %v423, %v423
      %v646 = vmul.f32 %v428, %v428
      %v647 = vmul.f32 %v433, %v433
      %v648 = vmul.f32 %v438, %v438
      %v649 = vmul.f32 %v443, %v443
      %v650 = vmul.f32 %v448, %v448
      %v651 = vmul.f32 %v453, %v453
      %v652 = vmul.f32 %v458, %v458
      %v653 = vmul.f32 %v463, %v463
      %v654 = vmul.f32 %v468, %v468
      %v655 = vmul.f32 %v473, %v473
      %v656 = vmul.f32 %v478, %v478
      %v657 = vmul.f32 %v483, %v483
      %v658 = vmul.f32 %v488, %v488
      %v659 = vmul.f32 %v493, %v493
      %v660 = vmul.f32 %v498, %v498
      %v661 = vmul.f32 %v503, %v503
      %v662 = vmul.f32 %v508, %v508
      %v663 = vmul.f32 %v513, %v513
      %v664 = vmul.f32 %v518, %v518
      %v665 = vmul.f32 %v523, %v523
      %v666 = vmul.f32 %v528, %v528
      %v667 = vmul.f32 %v533, %v533
      %v668 = vmul.f32 %v538, %v538
      %v669 = vmul.f32 %v543, %v543
      %v670 = vmul.f32 %v548, %v548
      %v671 = vmul.f32 %v553, %v553
      %v672 = vmul.f32 %v558, %v558
      %v673 = vmul.f32 %v563, %v563
      %v674 = vmul.f32 %v568, %v568
      %v675 = vmul.f32 %v573, %v573
      %v676 = vmul.f32 %v578, %v578
      %v677 = vadd.f32 %v645, %v646
      %v678 = vadd.f32 %v677, %v647
      %v679 = vadd.f32 %v678, %v648
      %v680 = vadd.f32 %v679, %v649
      %v681 = vadd.f32 %v680, %v650
      %v682 = vadd.f32 %v681, %v651
      %v683 = vadd.f32 %v682, %v652
      %v684 = vadd.f32 %v683, %v653
      %v685 = vadd.f32 %v684, %v654
      %v686 = vadd.f32 %v685, %v655
      %v687 = vadd.f32 %v686, %v656
      %v688 = vadd.f32 %v687, %v657
      %v689 = vadd.f32 %v688, %v658
      %v690 = vadd.f32 %v689, %v659
      %v691 = vadd.f32 %v690, %v660
      %v692 = vadd.f32 %v691, %v661
      %v693 = vadd.f32 %v692, %v662
      %v694 = vadd.f32 %v693, %v663
      %v695 = vadd.f32 %v694, %v664
      %v696 = vadd.f32 %v695, %v665
      %v697 = vadd.f32 %v696, %v666
      %v698 = vadd.f32 %v697, %v667
      %v699 = vadd.f32 %v698, %v668
      %v700 = vadd.f32 %v699, %v669
      %v701 = vadd.f32 %v700, %v670
      %v702 = vadd.f32 %v701, %v671
      %v703 = vadd.f32 %v702, %v672
      %v704 = vadd.f32 %v703, %v673
      %v705 = vadd.f32 %v704, %v674
      %v706 = vadd.f32 %v705, %v675
      %v707 = vadd.f32 %v706, %v676
      %708 = vst [vmem:[%s221] sm:$0xff] %v707
      %s709 = smul.u32 32, %s16
      %p710 = scmp.lt.s32.totalorder %s709, 63
      %s711 = scalar_select %p710, %s709, 63
      %s712 = smul.addr %s711, 8
      %s713 = scalar_lea.vmem %s2, %s712
      %p714 = scmp.lt.s32.totalorder %s16, 1
      %s715 = scalar_select %p714, %s16, 1
      %s716 = smul.addr %s715, 8
      %s717 = scalar_lea.vmem %s3, %s716
      %p718 = scmp.lt.s32.totalorder %s16, 1
      %s719 = scalar_select %p718, %s16, 1
      %s720 = smul.addr %s719, 8
      %s721 = scalar_lea.vmem %s4, %s720
      // Predicated region
      $region29: #{base_conv_no_act.2} parent=27 // pred_check
        %p722 = pneg %p81
      $region30: #{base_conv_no_act.2} parent=27 // pred_check_branch
        %724 = sbr.rel (%p722) target = $region32
      $region31: #{base_conv_no_act.2} parent=27 // pred_region
        %s725 = smul.u32 32, %s16
      $region32: #{base_conv_no_act.2} parent=27 // pred_fallthru
        _
      // Predicated region
      $region33: #{base_conv_no_act.2} parent=27 // pred_check
        %p726 = pneg %p107
      $region34: #{base_conv_no_act.2} parent=27 // pred_check_branch
        %728 = sbr.rel (%p726) target = $region36
      $region35: #{base_conv_no_act.2} parent=27 // pred_region
        _
      $region36: #{base_conv_no_act.2} parent=27 // pred_fallthru
        _
      // Predicated region
      $region37: #{base_conv_no_act.2} parent=27 // pred_check
        %p729 = pneg %p133
      $region38: #{base_conv_no_act.2} parent=27 // pred_check_branch
        %731 = sbr.rel (%p729) target = $region40
      $region39: #{base_conv_no_act.2} parent=27 // pred_region
        _
      $region40: #{base_conv_no_act.2} parent=27 // pred_fallthru
        _
    $region28: #{base_conv_no_act.2} parent=5 // pred_fallthru
      _
    %p732 = scmp.le.s32.totalorder 2, %s11
    // Predicated region
    $region41: #{base_conv_no_act.2} parent=5 // pred_check
      %p733 = pneg %p732
    $region42: #{base_conv_no_act.2} parent=5 // pred_check_branch
      %735 = sbr.rel (%p733) target = $region44
    $region43: #{base_conv_no_act.2} parent=5 // pred_region
      %s736 = ssub.s32 %s11, 2
      // Predicated region
      $region45: #{base_conv_no_act.2} parent=43 // pred_check
        %p737 = pneg %p87
      $region46: #{base_conv_no_act.2} parent=43 // pred_check_branch
        %739 = sbr.rel (%p737) target = $region48
      $region47: #{base_conv_no_act.2} parent=43 // pred_region
        %s740 = smul.u32 32, %s17
        %p741 = scmp.lt.s32.totalorder %s740, 63
        %s742 = scalar_select %p741, %s740, 63
        %s743 = smul.addr %s742, 8
        %s744 = scalar_lea.vmem %s2, %s743
      $region48: #{base_conv_no_act.2} parent=43 // pred_fallthru
        _
      // Predicated region
      $region49: #{base_conv_no_act.2} parent=43 // pred_check
        %p745 = pneg %p113
      $region50: #{base_conv_no_act.2} parent=43 // pred_check_branch
        %747 = sbr.rel (%p745) target = $region52
      $region51: #{base_conv_no_act.2} parent=43 // pred_region
        %p748 = scmp.lt.s32.totalorder %s17, 1
        %s749 = scalar_select %p748, %s17, 1
        %s750 = smul.addr %s749, 8
        %s751 = scalar_lea.vmem %s3, %s750
      $region52: #{base_conv_no_act.2} parent=43 // pred_fallthru
        _
      // Predicated region
      $region53: #{base_conv_no_act.2} parent=43 // pred_check
        %p752 = pneg %p139
      $region54: #{base_conv_no_act.2} parent=43 // pred_check_branch
        %754 = sbr.rel (%p752) target = $region56
      $region55: #{base_conv_no_act.2} parent=43 // pred_region
        %p755 = scmp.lt.s32.totalorder %s17, 1
        %s756 = scalar_select %p755, %s17, 1
        %s757 = smul.addr %s756, 8
        %s758 = scalar_lea.vmem %s4, %s757
      $region56: #{base_conv_no_act.2} parent=43 // pred_fallthru
        _
    $region44: #{base_conv_no_act.2} parent=5 // pred_fallthru
      _
  $region6: #{base_conv_no_act.2} parent=0 // loop_footer
    %s15 = sadd.s32 1, %s11
  $region7: #{base_conv_no_act.2} parent=0 // loop_footer_branch
    %10 = sbr.rel target = $region3
  $region8: #{base_conv_no_act.2} parent=0 // loop_exit
    _

</llo_original>
